<compile_context>
chip_gen: v7x
topology: tpu7x:2x2x1
jax: 0.10.0
libtpu: 0.0.40
codegen_flags: <defaults>
</compile_context>

<pallas_src>
import functools

import jax
import jax.numpy as jnp
from jax.experimental import pallas as pl
from jax.experimental.pallas import tpu as pltpu


def _round_up(x, m):
    return (x + m - 1) // m * m


def classifier_head_kernel(x_ref, w_ref, b_ref, o_ref, acc_ref, *,
                           seq_len, tile_s, needs_mask):
    # x_ref: (TS, B, D), w_ref: (D, Cp), b_ref: (1, Cp), o_ref: (B, Cp)
    # acc_ref: (B, D) f32 scratch, resident across the S grid axis.
    step = pl.program_id(0)

    @pl.when(step == 0)
    def _():
        acc_ref[...] = jnp.zeros_like(acc_ref)

    x = x_ref[...]
    if needs_mask:
        # Zero rows past the true sequence length on the (only) partial tile.
        row = step * tile_s + jax.lax.broadcasted_iota(jnp.int32, x.shape, 0)
        x = jnp.where(row < seq_len, x, 0.0)

    # Accumulate raw sums; the 1/S scale is applied once at finalize.
    acc_ref[...] += jnp.sum(x, axis=0)

    @pl.when(step == pl.num_programs(0) - 1)
    def _():
        pooled = acc_ref[...] * (1.0 / float(seq_len))          # (B, D)
        o_ref[...] = (
            jnp.dot(pooled, w_ref[...], preferred_element_type=jnp.float32)
            + b_ref[...]
        ).astype(o_ref.dtype)


def classifier_head(x, w, b, *, x_tile_budget_bytes=16 * 1024 * 1024):
    """x: (S, B, D) f32; w: (C, D) f32 (PyTorch Linear weight); b: (C,) f32.

    Returns (B, C) f32 = mean_S(x) @ w.T + b.
    """
    S, B, D = x.shape
    C = w.shape[0]

    # Lane-dense weight / bias / output: pad class dim to a multiple of 128 so
    # the output store is unmasked; slice the pad off outside the kernel.
    C_pad = _round_up(max(C, 128), 128)
    w_t = jnp.zeros((D, C_pad), jnp.float32).at[:, :C].set(w.T.astype(jnp.float32))
    b2d = jnp.zeros((1, C_pad), jnp.float32).at[0, :C].set(b.astype(jnp.float32))

    # Largest S-tile whose double buffer fits the byte budget (keeps the DMA
    # pipeline fed without blowing the scoped VMEM limit on any generation,
    # including v7x's smaller 64 MiB VMEM).
    bytes_per_row = B * D * 4
    ts = max(1, x_tile_budget_bytes // (2 * bytes_per_row))
    ts = min(S, ts)
    if ts >= 8:
        ts = (ts // 8) * 8
    grid_s = pl.cdiv(S, ts)
    needs_mask = (S % ts) != 0

    kernel = functools.partial(
        classifier_head_kernel, seq_len=S, tile_s=ts, needs_mask=needs_mask
    )

    # TODO(synk): for large B on v7x, add a leading "parallel" batch grid axis
    # so both TensorCores are used; with B=4 here it would only add overhead.
    out = pl.pallas_call(
        kernel,
        out_shape=jax.ShapeDtypeStruct((B, C_pad), jnp.float32),
        grid_spec=pltpu.PrefetchScalarGridSpec(
            num_scalar_prefetch=0,
            grid=(grid_s,),
            in_specs=[
                pl.BlockSpec((ts, B, D), lambda s: (s, 0, 0)),
                pl.BlockSpec((D, C_pad), lambda s: (0, 0)),
                pl.BlockSpec((1, C_pad), lambda s: (0, 0)),
            ],
            out_specs=pl.BlockSpec((B, C_pad), lambda s: (0, 0)),
            scratch_shapes=[pltpu.VMEM((B, D), jnp.float32)],
        ),
        compiler_params=pltpu.CompilerParams(
            dimension_semantics=("arbitrary",),   # S is a reduction axis
            vmem_limit_bytes=32 * 1024 * 1024,
        ),
    )(x, w_t, b2d)

    return out[:, :C]


if __name__ == "__main__":
    input_dim = 64
    num_classes = 10
    seq = 8
    batch = 4

    key = jax.random.PRNGKey(0)
    kx, kw, kb = jax.random.split(key, 3)

    # Input (seq, batch, dim) -- matches the permute(1, 2, 0) convention.
    x = jax.random.normal(kx, (seq, batch, input_dim), dtype=jnp.float32)

    # Deterministic Linear params (PyTorch-style uniform(-1/sqrt(D), 1/sqrt(D))).
    bound = 1.0 / (input_dim ** 0.5)
    w = jax.random.uniform(kw, (num_classes, input_dim), jnp.float32, -bound, bound)
    b = jax.random.uniform(kb, (num_classes,), jnp.float32, -bound, bound)

    out = classifier_head(x, w, b)
    out = jax.block_until_ready(out)

    # Reference check in plain JAX.
    ref = jnp.mean(x, axis=0) @ w.T + b
    assert out.shape == (batch, num_classes)
    assert jnp.allclose(out, ref, atol=1e-5, rtol=1e-5), "mismatch vs reference"

    print("KERNEL_OK")
</pallas_src>

<mosaic_0001>
module attributes {stable_mosaic.version = 11 : i64} {
  func.func @classifier_head_kernel(%arg0: i32, %arg1: memref<8x4x64xf32, #tpu.memory_space<vmem>>, %arg2: memref<64x128xf32, #tpu.memory_space<vmem>>, %arg3: memref<1x128xf32, #tpu.memory_space<vmem>>, %arg4: memref<4x128xf32, #tpu.memory_space<vmem>>, %arg5: memref<4x64xf32, #tpu.memory_space<vmem>>) attributes {dimension_semantics = [#tpu.dimension_semantics<arbitrary>], iteration_bounds = array<i64: 1>, scalar_prefetch = 0 : i64, scratch_operands = 1 : i64, tpu.core_type = #tpu.core_type<tc>, window_params = [{transform_indices = @transform_0, window_bounds = array<i64: 8, 4, 64>}, {pipeline_mode = #tpu.pipeline_mode<synchronous>, transform_indices = @transform_1, window_bounds = array<i64: 64, 128>}, {pipeline_mode = #tpu.pipeline_mode<synchronous>, transform_indices = @transform_2, window_bounds = array<i64: 1, 128>}, {pipeline_mode = #tpu.pipeline_mode<synchronous>, transform_indices = @transform_3, window_bounds = array<i64: 4, 128>}]} {
    %c0_i32 = arith.constant 0 : i32
    %0 = arith.cmpi eq, %arg0, %c0_i32 : i32
    %1 = arith.extui %0 : i1 to i32
    %c0_i32_0 = arith.constant 0 : i32
    %2 = arith.cmpi ne, %1, %c0_i32_0 : i32
    scf.if %2 {
      %cst_9 = arith.constant 0.000000e+00 : f32
      %11 = vector.broadcast %cst_9 : f32 to vector<4x64xf32>
      %c0_10 = arith.constant 0 : index
      %c0_11 = arith.constant 0 : index
      %12 = vector.load %arg5[%c0_10, %c0_11] : memref<4x64xf32, #tpu.memory_space<vmem>>, vector<4x64xf32>
      tpu.vector_store %arg5[%c0_10, %c0_11], %11 {strides = array<i32>} : memref<4x64xf32, #tpu.memory_space<vmem>>, vector<4x64xf32>,
    } else {
    }
    %c0 = arith.constant 0 : index
    %c0_1 = arith.constant 0 : index
    %c0_2 = arith.constant 0 : index
    %3 = vector.load %arg1[%c0, %c0_1, %c0_2] : memref<8x4x64xf32, #tpu.memory_space<vmem>>, vector<8x4x64xf32>
    %c0_3 = arith.constant 0 : index
    %c0_4 = arith.constant 0 : index
    %4 = vector.load %arg5[%c0_3, %c0_4] : memref<4x64xf32, #tpu.memory_space<vmem>>, vector<4x64xf32>
    %cst = arith.constant dense<0.000000e+00> : vector<4x64xf32>
    %5 = vector.multi_reduction <add>, %3, %cst [0] : vector<8x4x64xf32> to vector<4x64xf32>
    %6 = arith.addf %4, %5 : vector<4x64xf32>
    %c0_5 = arith.constant 0 : index
    %c0_6 = arith.constant 0 : index
    %7 = vector.load %arg5[%c0_5, %c0_6] : memref<4x64xf32, #tpu.memory_space<vmem>>, vector<4x64xf32>
    tpu.vector_store %arg5[%c0_5, %c0_6], %6 {strides = array<i32>} : memref<4x64xf32, #tpu.memory_space<vmem>>, vector<4x64xf32>,
    %c0_i32_7 = arith.constant 0 : i32
    %8 = arith.cmpi eq, %arg0, %c0_i32_7 : i32
    %9 = arith.extui %8 : i1 to i32
    %c0_i32_8 = arith.constant 0 : i32
    %10 = arith.cmpi ne, %9, %c0_i32_8 : i32
    scf.if %10 {
      %c0_9 = arith.constant 0 : index
      %c0_10 = arith.constant 0 : index
      %11 = vector.load %arg5[%c0_9, %c0_10] : memref<4x64xf32, #tpu.memory_space<vmem>>, vector<4x64xf32>
      %cst_11 = arith.constant 1.250000e-01 : f32
      %12 = vector.broadcast %cst_11 : f32 to vector<4x64xf32>
      %13 = arith.mulf %11, %12 : vector<4x64xf32>
      %c0_12 = arith.constant 0 : index
      %c0_13 = arith.constant 0 : index
      %14 = vector.load %arg2[%c0_12, %c0_13] : memref<64x128xf32, #tpu.memory_space<vmem>>, vector<64x128xf32>
      %cst_14 = arith.constant dense<0.000000e+00> : vector<4x128xf32>
      %15 = tpu.matmul %13, %14, %cst_14 {dimension_numbers = #tpu.dot_dimension_numbers<[1], [0], [0], [1], [0, 0, 1, 1], [], []>} : vector<4x64xf32>, vector<64x128xf32>, vector<4x128xf32> -> vector<4x128xf32>
      %c0_15 = arith.constant 0 : index
      %c0_16 = arith.constant 0 : index
      %16 = vector.load %arg3[%c0_15, %c0_16] : memref<1x128xf32, #tpu.memory_space<vmem>>, vector<1x128xf32>
      %17 = vector.broadcast %16 : vector<1x128xf32> to vector<4x128xf32>
      %18 = arith.addf %15, %17 : vector<4x128xf32>
      %c0_17 = arith.constant 0 : index
      %c0_18 = arith.constant 0 : index
      %19 = vector.load %arg4[%c0_17, %c0_18] : memref<4x128xf32, #tpu.memory_space<vmem>>, vector<4x128xf32>
      tpu.vector_store %arg4[%c0_17, %c0_18], %18 {strides = array<i32>} : memref<4x128xf32, #tpu.memory_space<vmem>>, vector<4x128xf32>,
    } else {
    }
    return
  }
  func.func @transform_0(%arg0: i32) -> (i32, i32, i32) {
    %c0_i32 = arith.constant 0 : i32
    %c0_i32_0 = arith.constant 0 : i32
    %c0_i32_1 = arith.constant 0 : i32
    return %arg0, %c0_i32, %c0_i32_0 : i32, i32, i32
  }
  func.func @transform_1(%arg0: i32) -> (i32, i32) {
    %c0_i32 = arith.constant 0 : i32
    %c0_i32_0 = arith.constant 0 : i32
    %c0_i32_1 = arith.constant 0 : i32
    return %c0_i32, %c0_i32_0 : i32, i32
  }
  func.func @transform_2(%arg0: i32) -> (i32, i32) {
    %c0_i32 = arith.constant 0 : i32
    %c0_i32_0 = arith.constant 0 : i32
    %c0_i32_1 = arith.constant 0 : i32
    return %c0_i32, %c0_i32_0 : i32, i32
  }
  func.func @transform_3(%arg0: i32) -> (i32, i32) {
    %c0_i32 = arith.constant 0 : i32
    %c0_i32_0 = arith.constant 0 : i32
    %c0_i32_1 = arith.constant 0 : i32
    return %c0_i32, %c0_i32_0 : i32, i32
  }
}

</mosaic_0001>

<llo_original>
// kernel: tpu_custom_call.1
$region0: #{tpu_custom_call.1}
  #allocation0 [shape = 'u32[]', space=smem, size = 0x4, offset = 0x4, fixed_abs, tag = 'smem constant byte address 0x4 - core index']
  #allocation1 [shape = 'u32[144,128]{1,0:T(1,128)}', space=vmem, size = 0x12000, scoped, tag = 'internal scratch']
  #allocation2 [shape = 'f32[4,64]{1,0:T(4,128)}', space=vmem, size = 0x800, scoped, tag = 'scratch operand']
  %s0 = inlined_call_operand.hbm [shape: f32[8,4,64], index: 0, kind: input, shape index: {}]
  %s1 = inlined_call_operand.hbm [shape: f32[64,128], index: 1, kind: input, shape index: {}]
  %s2 = inlined_call_operand.vmem [shape: f32[1,128], index: 2, kind: input, shape index: {}]
  %s3 = inlined_call_operand.hbm [shape: f32[4,128], index: 3, kind: output, shape index: {}]
  %s4 = sld [smem:[#allocation0]]
  $region38: #{tpu_custom_call.1} parent=0
    _
  %s6 = ssub.s32 1, %s4
  %s7 = scalar_select 0, %s6, %s4
  $region1: #{tpu_custom_call.1} parent=0
    #allocation3 [shape = 'u8[16384]{0}', space=vmem, size = 0x4000, scoped, tag = 'input window, operand 0, single buffered']
    #allocation4 [shape = 's32[1]{0}', space=sflag, size = 0x4, scoped, tag = 'scoped memory for tpu_custom_call.1']
    #allocation5 [shape = 's32[1]{0}', space=sflag, size = 0x4, scoped, tag = 'scoped memory for tpu_custom_call.1']
    #allocation6 [shape = 'u8[32768]{0}', space=vmem, size = 0x8000, scoped, tag = 'input window, operand 1, single buffered']
    #allocation7 [shape = 's32[1]{0}', space=sflag, size = 0x4, scoped, tag = 'scoped memory for tpu_custom_call.1']
    #allocation8 [shape = 'u8[2048]{0}', space=vmem, size = 0x800, scoped, tag = 'output window, operand 0, single buffered']
    %8 = vsyncpa [#allocation4], 0
    %9 = vsyncpa [#allocation7], 0
    %10 = vsyncpa [#allocation5], 0
    // Predicated region
    $region2: #{tpu_custom_call.1} parent=1 // pred_check
      _
    $region3: #{tpu_custom_call.1} parent=1 // pred_check_branch
      %12 = sbr.rel (0) target = $region5
    $region4: #{tpu_custom_call.1} parent=1 // pred_region
      %s14 = ssub.s32 512, 512
      %15 = vsyncadd [#allocation4], %s14
      %s16 = sshll.u32 [#allocation3], 4
      %s17 = int_to_ptr.vmem [resolvable:$true] %s16
      %22 = dma.hbm_to_vmem [thread:$0]  %s0, 512, %s17, [#allocation4], 64, 64, 4
    $region5: #{tpu_custom_call.1} parent=1 // pred_fallthru
      _
    // Predicated region
    $region6: #{tpu_custom_call.1} parent=1 // pred_check
      _
    $region7: #{tpu_custom_call.1} parent=1 // pred_check_branch
      %24 = sbr.rel (0) target = $region9
    $region8: #{tpu_custom_call.1} parent=1 // pred_region
      %s26 = ssub.s32 1024, 1024
      %27 = vsyncadd [#allocation7], %s26
      %s28 = sshll.u32 [#allocation6], 4
      %s29 = int_to_ptr.vmem [resolvable:$true] %s28
      %34 = dma.hbm_to_vmem [thread:$0]  %s1, 1024, %s29, [#allocation7], 128, 128, 8
    $region9: #{tpu_custom_call.1} parent=1 // pred_fallthru
      _
    // Predicated region
    $region10: #{tpu_custom_call.1} parent=1 // pred_check
      _
    $region11: #{tpu_custom_call.1} parent=1 // pred_check_branch
      %36 = sbr.rel (0) target = $region13
    $region12: #{tpu_custom_call.1} parent=1 // pred_region
      _
    $region13: #{tpu_custom_call.1} parent=1 // pred_fallthru
      _
    // Predicated region
    $region14: #{tpu_custom_call.1} parent=1 // pred_check
      _
    $region15: #{tpu_custom_call.1} parent=1 // pred_check_branch
      %38 = sbr.rel (0) target = $region17
    $region16: #{tpu_custom_call.1} parent=1 // pred_region
      %39 = dma.done [#allocation4], 512
    $region17: #{tpu_custom_call.1} parent=1 // pred_fallthru
      _
    // Predicated region
    $region18: #{tpu_custom_call.1} parent=1 // pred_check
      _
    $region19: #{tpu_custom_call.1} parent=1 // pred_check_branch
      %41 = sbr.rel (0) target = $region21
    $region20: #{tpu_custom_call.1} parent=1 // pred_region
      %42 = dma.done [#allocation7], 1024
    $region21: #{tpu_custom_call.1} parent=1 // pred_fallthru
      _
    %p43 = scmp.eq.s32.totalorder 0, 0
    // Predicated region
    $region22: #{tpu_custom_call.1} parent=1 // pred_check
      %p44 = pneg %p43
    $region23: #{tpu_custom_call.1} parent=1 // pred_check_branch
      %46 = sbr.rel (%p44) target = $region25
    $region24: #{tpu_custom_call.1} parent=1 // pred_region
      %vm47 = vcmask 519168
      %48 = vst.msk [vmem:[#allocation2] sm:$0xf] %vm47, 0.0
    $region25: #{tpu_custom_call.1} parent=1 // pred_fallthru
      _
    %v49 = vld [vmem:[#allocation3] sm:$0xf]
    %v50 = vld [vmem:[#allocation3 + $0x4] sm:$0xf]
    %v51 = vld [vmem:[#allocation3 + $0x8] sm:$0xf]
    %v52 = vld [vmem:[#allocation3 + $0xc] sm:$0xf]
    %v53 = vld [vmem:[#allocation3 + $0x10] sm:$0xf]
    %v54 = vld [vmem:[#allocation3 + $0x14] sm:$0xf]
    %v55 = vld [vmem:[#allocation3 + $0x18] sm:$0xf]
    %v56 = vld [vmem:[#allocation3 + $0x1c] sm:$0xf]
    %v57 = vld [vmem:[#allocation2] sm:$0xf]
    %vm58 = vcmask 519168
    %v59 = vsel %vm58, %v49, 0.0
    %v60 = vsel %vm58, %v50, 0.0
    %v61 = vadd.f32 %v59, %v60
    %v62 = vsel %vm58, %v51, 0.0
    %v63 = vadd.f32 %v61, %v62
    %v64 = vsel %vm58, %v52, 0.0
    %v65 = vadd.f32 %v63, %v64
    %v66 = vsel %vm58, %v53, 0.0
    %v67 = vadd.f32 %v65, %v66
    %v68 = vsel %vm58, %v54, 0.0
    %v69 = vadd.f32 %v67, %v68
    %v70 = vsel %vm58, %v55, 0.0
    %v71 = vadd.f32 %v69, %v70
    %v72 = vsel %vm58, %v56, 0.0
    %v73 = vadd.f32 %v71, %v72
    %v74 = vadd.f32 %v57, %v73
    %75 = vst.msk [vmem:[#allocation2] sm:$0xf] %vm58, %v74
    // Predicated region
    $region26: #{tpu_custom_call.1} parent=1 // pred_check
      %p76 = pneg %p43
    $region27: #{tpu_custom_call.1} parent=1 // pred_check_branch
      %78 = sbr.rel (%p76) target = $region29
    $region28: #{tpu_custom_call.1} parent=1 // pred_region
      %v79 = vld [vmem:[#allocation2] sm:$0xf]
      %v80 = vmul.f32 %v79, 0.125
      %v81 = vld [vmem:[#allocation6] sm:$0xff]
      %v82 = vld [vmem:[#allocation6 + $0x8] sm:$0xff]
      %v83 = vld [vmem:[#allocation6 + $0x10] sm:$0xff]
      %v84 = vld [vmem:[#allocation6 + $0x18] sm:$0xff]
      %v85 = vld [vmem:[#allocation6 + $0x20] sm:$0xff]
      %v86 = vld [vmem:[#allocation6 + $0x28] sm:$0xff]
      %v87 = vld [vmem:[#allocation6 + $0x30] sm:$0xff]
      %v88 = vld [vmem:[#allocation6 + $0x38] sm:$0xff]
      %v89 = vld [vmem:[%s2] sm:$0x1]
      %v91 = vlaneseq
      %v92 = vshrl.u32 %v91, 7
      %v93 = vsub.s32 0, %v92
      %v94 = vrot.slane %v89, %v93
      %vm96 = vcmask 523264
      %v98 = vsel %vm96, %v80, 0
      %100 = vmatprep.subr.mxu0 0.0
      %101 = vmatpush1.msra.mxu0 %v81
      %102 = vmatprep.subr.mxu0 0.0
      %103 = vmatpush1.msra.mxu0 %v82
      %104 = vmatprep.subr.mxu0 0.0
      %105 = vmatpush1.msra.mxu0 %v83
      %106 = vmatprep.subr.mxu0 0.0
      %107 = vmatpush1.msra.mxu0 %v84
      %108 = vmatprep.subr.mxu0 0.0
      %109 = vmatpush1.msra.mxu0 %v85
      %110 = vmatprep.subr.mxu0 0.0
      %111 = vmatpush1.msra.mxu0 %v86
      %112 = vmatprep.subr.mxu0 0.0
      %113 = vmatpush1.msra.mxu0 %v87
      %114 = vmatprep.subr.mxu0 0.0
      %115 = vmatpush1.msra.mxu0 %v88
      %116 = vmatprep.subr.mxu0 0.0
      %117 = vmatpush1.msra.mxu0 0.0
      %118 = vmatprep.subr.mxu0 0.0
      %119 = vmatpush1.msra.mxu0 0.0
      %120 = vmatprep.subr.mxu0 0.0
      %121 = vmatpush1.msra.mxu0 0.0
      %122 = vmatprep.subr.mxu0 0.0
      %123 = vmatpush1.msra.mxu0 0.0
      %124 = vmatprep.subr.mxu0 0.0
      %125 = vmatpush1.msra.mxu0 0.0
      %126 = vmatprep.subr.mxu0 0.0
      %127 = vmatpush1.msra.mxu0 0.0
      %128 = vmatprep.subr.mxu0 0.0
      %129 = vmatpush1.msra.mxu0 0.0
      %130 = vmatprep.subr.mxu0 0.0
      %131 = vmatpush1.msra.mxu0 0.0
      %132 = vmatprep.subr.mxu0 0.0
      %133 = vmatpush1.msra.mxu0 0.0
      %134 = vmatprep.subr.mxu0 0.0
      %135 = vmatpush1.msra.mxu0 0.0
      %136 = vmatprep.subr.mxu0 0.0
      %137 = vmatpush1.msra.mxu0 0.0
      %138 = vmatprep.subr.mxu0 0.0
      %139 = vmatpush1.msra.mxu0 0.0
      %140 = vmatprep.subr.mxu0 0.0
      %141 = vmatpush1.msra.mxu0 0.0
      %142 = vmatprep.subr.mxu0 0.0
      %143 = vmatpush1.msra.mxu0 0.0
      %144 = vmatprep.subr.mxu0 0.0
      %145 = vmatpush1.msra.mxu0 0.0
      %146 = vmatprep.subr.mxu0 0.0
      %147 = vmatpush1.msra.mxu0 0.0
      %148 = vmatprep.subr.mxu0 0.0
      %149 = vmatpush1.msra.mxu0 0.0
      %150 = vmatprep.subr.mxu0 0.0
      %151 = vmatpush1.msra.mxu0 0.0
      %152 = vmatprep.subr.mxu0 0.0
      %153 = vmatpush1.msra.mxu0 0.0
      %154 = vmatprep.subr.mxu0 0.0
      %155 = vmatpush1.msra.mxu0 0.0
      %156 = vmatprep.subr.mxu0 0.0
      %157 = vmatpush1.msra.mxu0 0.0
      %158 = vmatprep.subr.mxu0 0.0
      %159 = vmatpush1.msra.mxu0 0.0
      %160 = vmatprep.subr.mxu0 0.0
      %161 = vmatpush1.msra.mxu0 0.0
      %162 = vmatprep.subr.mxu0 0.0
      %163 = vmatpush1.msra.mxu0 0.0
      %164 = vmatprep.mubr.f32.mxu0 0.0
      %165 = vmatmul.mubr.f32.gmra.mrb[0].mxu0 %v98
      %v166 = vpop.f32.mrb[0].mxu0
      %v167 = vadd.f32 %v94, %v166
      %v168 = vpop.f32.mrb[0].mxu0
      %169 = vdwg.mxu0
      %170 = vst [vmem:[#allocation8] sm:$0xf] %v167
    $region29: #{tpu_custom_call.1} parent=1 // pred_fallthru
      _
    // Predicated region
    $region30: #{tpu_custom_call.1} parent=1 // pred_check
      _
    $region31: #{tpu_custom_call.1} parent=1 // pred_check_branch
      %172 = sbr.rel (0) target = $region33
    $region32: #{tpu_custom_call.1} parent=1 // pred_region
      %s174 = ssub.s32 64, 64
      %175 = vsyncadd [#allocation5], %s174
      %s177 = sshll.u32 [#allocation8], 4
      %s178 = int_to_ptr.vmem [resolvable:$true] %s177
      %180 = dma.vmem_to_hbm [thread:$0]  %s178, 64, %s3, [#allocation5]
    $region33: #{tpu_custom_call.1} parent=1 // pred_fallthru
      _
    // Predicated region
    $region34: #{tpu_custom_call.1} parent=1 // pred_check
      _
    $region35: #{tpu_custom_call.1} parent=1 // pred_check_branch
      %182 = sbr.rel (0) target = $region37
    $region36: #{tpu_custom_call.1} parent=1 // pred_region
      %183 = dma.done [#allocation5], 64
    $region37: #{tpu_custom_call.1} parent=1 // pred_fallthru
      _
    %184 = vsyncpa [#allocation4], 1
    %185 = vsyncpa [#allocation7], 1
    %186 = vsyncpa [#allocation5], 1

</llo_original>
